<compile_context>
chip_gen: v7x
topology: tpu7x:2x2x1
jax: 0.10.0
libtpu: 0.0.40
codegen_flags: <defaults>
</compile_context>

<pallas_src>
import functools

import numpy as np
import jax
import jax.numpy as jnp
from jax.experimental import pallas as pl
from jax.experimental.pallas import tpu as pltpu


class DefaultConfig:
    add_centerness = True
    centerness_loss_sqrt = True


# ----------------------------------------------------------------------------
# coords helper (matches FCOS coords_fmap2orig)
# ----------------------------------------------------------------------------
def coords_fmap2orig(h, w, stride):
    shift_x = np.arange(0, w * stride, stride, dtype=np.float32)
    shift_y = np.arange(0, h * stride, stride, dtype=np.float32)
    sy, sx = np.meshgrid(shift_y, shift_x, indexing="ij")
    coords = np.stack([sx.reshape(-1), sy.reshape(-1)], axis=-1) + stride // 2
    return coords  # [h*w, 2]  (x, y)


# ----------------------------------------------------------------------------
# Pallas kernel: per-location score / class / box computation
# ----------------------------------------------------------------------------
def _detect_head_kernel(cls_ref, cnt_ref, reg_ref, coords_ref,
                        score_ref, class_ref, box_ref,
                        *, n_valid, tile_n, add_centerness, centerness_sqrt):
    cls = cls_ref[0]                          # [C, T] raw logits (f32 or bf16)
    cnt = cnt_ref[0].astype(jnp.float32)      # [1, T]
    reg = reg_ref[0].astype(jnp.float32)      # [4, T] : l, t, r, b
    coords = coords_ref[...]                  # [4, T] : x, y, x, y  (f32)

    C = cls.shape[0]

    # ---- class id: max/argmax over RAW logits (sigmoid is monotone; ties keep
    #      first occurrence, matching torch.max) --------------------------------
    max_logit = jnp.max(cls, axis=0, keepdims=True)                        # [1, T]
    row_idx = jax.lax.broadcasted_iota(jnp.int32, cls.shape, 0)
    cls_idx = jnp.min(jnp.where(cls == max_logit, row_idx, C),
                      axis=0, keepdims=True)                               # [1, T]
    class_ref[0] = cls_idx + 1                                             # 1-based classes

    # ---- sigmoid only on the [1,T] rows: EUP exp + approx reciprocal (EUP) ----
    max_p = pl.reciprocal(1.0 + jnp.exp(-max_logit.astype(jnp.float32)), approx=True)
    cnt_p = pl.reciprocal(1.0 + jnp.exp(-cnt), approx=True)

    if add_centerness:
        score = max_p * cnt_p
        if centerness_sqrt:
            score = jnp.sqrt(score)
    else:
        score = max_p

    # mask padded lanes so they can never enter top-k
    pos = pl.program_id(1) * tile_n + jax.lax.broadcasted_iota(jnp.int32, score.shape, 1)
    score_ref[0] = jnp.where(pos < n_valid, score, -jnp.inf)

    # ---- boxes: one fused add  box = coords_xyxy + sign * reg,
    #      sign = (-1,-1,+1,+1) per row (no slice/concat shuffles) --------------
    sign = jnp.where(jax.lax.broadcasted_iota(jnp.int32, reg.shape, 0) < 2, -1.0, 1.0)
    box_ref[0] = coords + sign * reg


def _round_up(x, m):
    return ((x + m - 1) // m) * m


def _choose_tile_n(C, N, itemsize):
    """Pick a lane-tile from a VMEM budget (double-buffered inputs + outputs)."""
    in_bytes_per_lane = (C + 1 + 4) * itemsize + 4 * 4          # cls, cnt, reg + coords(f32)
    out_bytes_per_lane = (1 + 4) * 4 + 1 * 4                    # score, box (f32) + class (i32)
    per_lane = 2 * (in_bytes_per_lane + out_bytes_per_lane)     # x2 double buffering
    budget = 24 << 20                                           # keeps headroom on v7x's 64 MiB
    tile = budget // per_lane
    tile = max(128, min(8192, (tile // 128) * 128))
    tile = min(tile, _round_up(N, 128))
    return tile


def detect_head_pallas(cls, cnt, reg, coords_xyxy, *,
                       add_centerness=True, centerness_sqrt=True):
    """cls [B,C,N], cnt [B,1,N], reg [B,4,N], coords_xyxy [4,N]
       -> scores [B,Npad] (f32, padded lanes = -inf),
          classes [B,Npad] (i32),
          boxes   [B,4,Npad] (f32, channels-first: x1,y1,x2,y2 rows)."""
    B, C, N = cls.shape
    itemsize = jnp.dtype(cls.dtype).itemsize
    tile_n = _choose_tile_n(C, N, itemsize)
    n_pad = _round_up(N, tile_n)
    n_tiles = n_pad // tile_n

    def pad(x):
        p = n_pad - x.shape[-1]
        if p == 0:
            return x
        cfg = [(0, 0)] * (x.ndim - 1) + [(0, p)]
        return jnp.pad(x, cfg)

    cls_p, cnt_p, reg_p, coords_p = pad(cls), pad(cnt), pad(reg), pad(coords_xyxy)

    kernel = functools.partial(_detect_head_kernel,
                               n_valid=N, tile_n=tile_n,
                               add_centerness=add_centerness,
                               centerness_sqrt=centerness_sqrt)

    in_bytes = tile_n * ((C + 1 + 4) * itemsize + 4 * 4)
    out_bytes = tile_n * (1 + 1 + 4) * 4
    vmem_limit = int(min(64 << 20, max(32 << 20, 4 * (in_bytes + out_bytes))))

    scores, classes, boxes = pl.pallas_call(
        kernel,
        grid=(B, n_tiles),
        in_specs=[
            pl.BlockSpec((1, C, tile_n), lambda b, n: (b, 0, n)),
            pl.BlockSpec((1, 1, tile_n), lambda b, n: (b, 0, n)),
            pl.BlockSpec((1, 4, tile_n), lambda b, n: (b, 0, n)),
            pl.BlockSpec((4, tile_n), lambda b, n: (0, n)),
        ],
        out_specs=[
            pl.BlockSpec((1, 1, tile_n), lambda b, n: (b, 0, n)),
            pl.BlockSpec((1, 1, tile_n), lambda b, n: (b, 0, n)),
            pl.BlockSpec((1, 4, tile_n), lambda b, n: (b, 0, n)),
        ],
        out_shape=[
            jax.ShapeDtypeStruct((B, 1, n_pad), jnp.float32),
            jax.ShapeDtypeStruct((B, 1, n_pad), jnp.int32),
            jax.ShapeDtypeStruct((B, 4, n_pad), jnp.float32),
        ],
        compiler_params=pltpu.CompilerParams(
            dimension_semantics=("parallel", "parallel"),
            vmem_limit_bytes=vmem_limit,
        ),
    )(cls_p, cnt_p, reg_p, coords_p)

    return scores[:, 0, :], classes[:, 0, :], boxes


# ----------------------------------------------------------------------------
# Pure-JAX reference of the per-location math (for correctness checking)
# ----------------------------------------------------------------------------
def _reference_jax(cls, cnt, reg, coords_xyxy):
    cls_p = jax.nn.sigmoid(cls.astype(jnp.float32))
    cnt_p = jax.nn.sigmoid(cnt.astype(jnp.float32))
    scores = jnp.sqrt(jnp.max(cls_p, axis=1) * cnt_p[:, 0, :])
    classes = jnp.argmax(cls_p, axis=1).astype(jnp.int32) + 1
    x, y = coords_xyxy[0], coords_xyxy[1]
    r = reg.astype(jnp.float32)
    boxes = jnp.stack([x - r[:, 0], y - r[:, 1], x + r[:, 2], y + r[:, 3]], axis=1)
    return scores, classes, boxes  # [B,N], [B,N], [B,4,N]


# ----------------------------------------------------------------------------
# Host-side (numpy) NMS post-process — variable-length outputs, like the reference
# ----------------------------------------------------------------------------
def box_nms_np(boxes, scores, thr):
    if boxes.shape[0] == 0:
        return np.zeros((0,), dtype=np.int64)
    x1, y1, x2, y2 = boxes[:, 0], boxes[:, 1], boxes[:, 2], boxes[:, 3]
    areas = (x2 - x1 + 1) * (y2 - y1 + 1)
    order = scores.argsort()[::-1]
    keep = []
    while order.size > 0:
        i = int(order[0])
        keep.append(i)
        if order.size == 1:
            break
        xmin = np.maximum(x1[order[1:]], x1[i])
        ymin = np.maximum(y1[order[1:]], y1[i])
        xmax = np.minimum(x2[order[1:]], x2[i])
        ymax = np.minimum(y2[order[1:]], y2[i])
        inter = np.clip(xmax - xmin + 1, 0, None) * np.clip(ymax - ymin + 1, 0, None)
        iou = inter / (areas[i] + areas[order[1:]] - inter)
        idx = np.nonzero(iou <= thr)[0]
        if idx.size == 0:
            break
        order = order[idx + 1]
    return np.array(keep, dtype=np.int64)


def batched_nms_np(boxes, scores, idxs, iou_threshold):
    if boxes.size == 0:
        return np.zeros((0,), dtype=np.int64)
    max_coordinate = boxes.max()
    offsets = idxs.astype(boxes.dtype) * (max_coordinate + 1)
    boxes_for_nms = boxes + offsets[:, None]
    return box_nms_np(boxes_for_nms, scores, iou_threshold)


# ----------------------------------------------------------------------------
# Full head
# ----------------------------------------------------------------------------
class DetectHeadMultispectralJAX:
    def __init__(self, score_threshold, nms_iou_threshold, max_detection_boxes_num,
                 strides, config=None, input_dtype=None):
        self.score_threshold = score_threshold
        self.nms_iou_threshold = nms_iou_threshold
        self.max_detection_boxes_num = max_detection_boxes_num
        self.strides = strides
        self.config = DefaultConfig if config is None else config
        # optional bf16 input cast (halves HBM traffic); coords/boxes stay f32
        self.input_dtype = input_dtype

    @staticmethod
    def _flatten_levels(level_list):
        # list of [B,C,h,w] -> [B, C, sum(h*w)]   (same location order as NHWC flatten)
        return jnp.concatenate(
            [x.reshape(x.shape[0], x.shape[1], -1) for x in level_list], axis=-1)

    def _build_coords(self, cls_list_r, cls_list_i):
        def level_coords(lst):
            return np.concatenate(
                [coords_fmap2orig(int(p.shape[2]), int(p.shape[3]), s)
                 for p, s in zip(lst, self.strides)], axis=0)        # [sum(hw), 2]
        coords = np.concatenate([level_coords(cls_list_r),
                                 level_coords(cls_list_i)], axis=0)  # [N, 2]  RGB + IR
        xy = coords.T.astype(np.float32)                             # [2, N] : x, y
        return jnp.asarray(np.concatenate([xy, xy], axis=0))         # [4, N] : x, y, x, y

    def __call__(self, inputs_r, inputs_i):
        cls = jnp.concatenate([self._flatten_levels(inputs_r[0]),
                               self._flatten_levels(inputs_i[0])], axis=-1)
        cnt = jnp.concatenate([self._flatten_levels(inputs_r[1]),
                               self._flatten_levels(inputs_i[1])], axis=-1)
        reg = jnp.concatenate([self._flatten_levels(inputs_r[2]),
                               self._flatten_levels(inputs_i[2])], axis=-1)
        coords_xyxy = self._build_coords(inputs_r[0], inputs_i[0])
        N = cls.shape[-1]

        if self.input_dtype is not None:
            cls = cls.astype(self.input_dtype)
            cnt = cnt.astype(self.input_dtype)
            reg = reg.astype(self.input_dtype)

        scores, classes, boxes_cn = detect_head_pallas(
            cls, cnt, reg, coords_xyxy,
            add_centerness=self.config.add_centerness,
            centerness_sqrt=self.config.centerness_loss_sqrt)

        # top-k on the (valid) location count; padded lanes are -inf and max_num <= N
        max_num = min(self.max_detection_boxes_num, N)
        topk_scores, topk_ind = jax.lax.top_k(scores, max_num)
        topk_classes = jnp.take_along_axis(classes, topk_ind, axis=1)
        # gather boxes in channels-first layout, transpose only the [B,4,max_num] result
        idx = jnp.broadcast_to(topk_ind[:, None, :], (boxes_cn.shape[0], 4, max_num))
        topk_boxes = jnp.transpose(jnp.take_along_axis(boxes_cn, idx, axis=2), (0, 2, 1))

        topk_scores, topk_classes, topk_boxes = jax.block_until_ready(
            (topk_scores, topk_classes, topk_boxes))

        return self._post_process(np.asarray(topk_scores),
                                  np.asarray(topk_classes),
                                  np.asarray(topk_boxes))

    def _post_process(self, cls_scores_topk, cls_classes_topk, boxes_topk):
        # TODO(synk): ragged threshold masking + greedy NMS stay host-side (data-dependent
        # variable-length loops, as in the reference's Python loop).
        _scores, _classes, _boxes = [], [], []
        for batch in range(cls_classes_topk.shape[0]):
            mask = cls_scores_topk[batch] >= self.score_threshold
            sb = cls_scores_topk[batch][mask]
            cb = cls_classes_topk[batch][mask]
            bb = boxes_topk[batch][mask]
            keep = batched_nms_np(bb, sb, cb, self.nms_iou_threshold)
            _scores.append(sb[keep])
            _classes.append(cb[keep])
            _boxes.append(bb[keep])
        return _scores, _classes, _boxes


# ----------------------------------------------------------------------------
if __name__ == "__main__":
    key = jax.random.PRNGKey(0)
    B, num_classes = 2, 4
    strides = [8, 16]
    spatial = [(16, 16), (8, 8)]

    keys = iter(jax.random.split(key, 12))

    def make_pyramid():
        cls_list = [jax.random.normal(next(keys), (B, num_classes, h, w), jnp.float32)
                    for (h, w) in spatial]
        cnt_list = [jax.random.normal(next(keys), (B, 1, h, w), jnp.float32)
                    for (h, w) in spatial]
        reg_list = [jnp.abs(jax.random.normal(next(keys), (B, 4, h, w), jnp.float32)) * 4.0
                    for (h, w) in spatial]
        return [cls_list, cnt_list, reg_list]

    inputs_r = make_pyramid()
    inputs_i = make_pyramid()

    head = DetectHeadMultispectralJAX(score_threshold=0.3,
                                      nms_iou_threshold=0.5,
                                      max_detection_boxes_num=50,
                                      strides=strides)

    # --- kernel vs pure-JAX reference on the flattened tensors ----------------
    cls = jnp.concatenate([head._flatten_levels(inputs_r[0]),
                           head._flatten_levels(inputs_i[0])], axis=-1)
    cnt = jnp.concatenate([head._flatten_levels(inputs_r[1]),
                           head._flatten_levels(inputs_i[1])], axis=-1)
    reg = jnp.concatenate([head._flatten_levels(inputs_r[2]),
                           head._flatten_levels(inputs_i[2])], axis=-1)
    coords_xyxy = head._build_coords(inputs_r[0], inputs_i[0])
    N = cls.shape[-1]

    k_scores, k_classes, k_boxes = jax.block_until_ready(
        detect_head_pallas(cls, cnt, reg, coords_xyxy))
    r_scores, r_classes, r_boxes = _reference_jax(cls, cnt, reg, coords_xyxy)

    # approx reciprocal in the sigmoid -> loose score tolerance; classes/boxes exact
    np.testing.assert_allclose(np.asarray(k_scores[:, :N]), np.asarray(r_scores),
                               rtol=2e-2, atol=2e-2)
    assert np.array_equal(np.asarray(k_classes[:, :N]), np.asarray(r_classes))
    np.testing.assert_allclose(np.asarray(k_boxes[:, :, :N]), np.asarray(r_boxes),
                               rtol=1e-5, atol=1e-5)

    # --- end-to-end head (f32) -------------------------------------------------
    scores, classes, boxes = head(inputs_r, inputs_i)
    assert len(scores) == B and len(classes) == B and len(boxes) == B
    for b in range(B):
        assert boxes[b].shape[-1] == 4
        assert scores[b].shape[0] == classes[b].shape[0] == boxes[b].shape[0]

    # --- end-to-end head with bf16 inputs (halved HBM traffic; boxes stay f32) --
    head_bf16 = DetectHeadMultispectralJAX(score_threshold=0.3,
                                           nms_iou_threshold=0.5,
                                           max_detection_boxes_num=50,
                                           strides=strides,
                                           input_dtype=jnp.bfloat16)
    scores_b, classes_b, boxes_b = head_bf16(inputs_r, inputs_i)
    assert len(scores_b) == B and len(classes_b) == B and len(boxes_b) == B

    print("KERNEL_OK")
</pallas_src>

<mosaic_0001>
module attributes {stable_mosaic.version = 11 : i64} {
  func.func @_detect_head_kernel(%arg0: i32, %arg1: i32, %arg2: memref<1x4x640xf32, #tpu.memory_space<vmem>>, %arg3: memref<1x1x640xf32, #tpu.memory_space<vmem>>, %arg4: memref<1x4x640xf32, #tpu.memory_space<vmem>>, %arg5: memref<4x640xf32, #tpu.memory_space<vmem>>, %arg6: memref<1x1x640xf32, #tpu.memory_space<vmem>>, %arg7: memref<1x1x640xi32, #tpu.memory_space<vmem>>, %arg8: memref<1x4x640xf32, #tpu.memory_space<vmem>>) attributes {dimension_semantics = [#tpu.dimension_semantics<parallel>, #tpu.dimension_semantics<parallel>], iteration_bounds = array<i64: 2, 1>, scalar_prefetch = 0 : i64, scratch_operands = 0 : i64, tpu.core_type = #tpu.core_type<tc>, window_params = [{transform_indices = @transform_0, window_bounds = array<i64: 1, 4, 640>}, {transform_indices = @transform_1, window_bounds = array<i64: 1, 1, 640>}, {transform_indices = @transform_2, window_bounds = array<i64: 1, 4, 640>}, {transform_indices = @transform_3, window_bounds = array<i64: 4, 640>}, {transform_indices = @transform_4, window_bounds = array<i64: 1, 1, 640>}, {transform_indices = @transform_5, window_bounds = array<i64: 1, 1, 640>}, {transform_indices = @transform_6, window_bounds = array<i64: 1, 4, 640>}]} {
    %c0 = arith.constant 0 : index
    %c0_0 = arith.constant 0 : index
    %c0_1 = arith.constant 0 : index
    %0 = vector.load %arg2[%c0, %c0_0, %c0_1] : memref<1x4x640xf32, #tpu.memory_space<vmem>>, vector<1x4x640xf32>
    %1 = vector.shape_cast %0 : vector<1x4x640xf32> to vector<4x640xf32>
    %c0_2 = arith.constant 0 : index
    %c0_3 = arith.constant 0 : index
    %c0_4 = arith.constant 0 : index
    %2 = vector.load %arg3[%c0_2, %c0_3, %c0_4] : memref<1x1x640xf32, #tpu.memory_space<vmem>>, vector<1x1x640xf32>
    %3 = vector.shape_cast %2 : vector<1x1x640xf32> to vector<1x640xf32>
    %c0_5 = arith.constant 0 : index
    %c0_6 = arith.constant 0 : index
    %c0_7 = arith.constant 0 : index
    %4 = vector.load %arg4[%c0_5, %c0_6, %c0_7] : memref<1x4x640xf32, #tpu.memory_space<vmem>>, vector<1x4x640xf32>
    %5 = vector.shape_cast %4 : vector<1x4x640xf32> to vector<4x640xf32>
    %c0_8 = arith.constant 0 : index
    %c0_9 = arith.constant 0 : index
    %6 = vector.load %arg5[%c0_8, %c0_9] : memref<4x640xf32, #tpu.memory_space<vmem>>, vector<4x640xf32>
    %cst = arith.constant dense<0xFF800000> : vector<640xf32>
    %7 = vector.multi_reduction <maximumf>, %1, %cst [0] : vector<4x640xf32> to vector<640xf32>
    %8 = vector.shape_cast %7 : vector<640xf32> to vector<1x640xf32>
    %9 = tpu.iota {dimensions = array<i32: 0>} : vector<4x640xi32>
    %10 = vector.broadcast %8 : vector<1x640xf32> to vector<4x640xf32>
    %11 = arith.cmpf oeq, %1, %10 : vector<4x640xf32>
    %c4_i32 = arith.constant 4 : i32
    %12 = vector.broadcast %c4_i32 : i32 to vector<4x640xi32>
    %13 = arith.select %11, %9, %12 : vector<4x640xi1>, vector<4x640xi32>
    %cst_10 = arith.constant dense<2147483647> : vector<640xi32>
    %14 = vector.multi_reduction <minsi>, %13, %cst_10 [0] : vector<4x640xi32> to vector<640xi32>
    %15 = vector.shape_cast %14 : vector<640xi32> to vector<1x640xi32>
    %c1_i32 = arith.constant 1 : i32
    %16 = vector.broadcast %c1_i32 : i32 to vector<1x640xi32>
    %17 = arith.addi %15, %16 : vector<1x640xi32>
    %c0_11 = arith.constant 0 : index
    %c0_12 = arith.constant 0 : index
    %c0_13 = arith.constant 0 : index
    %18 = vector.load %arg7[%c0_11, %c0_12, %c0_13] : memref<1x1x640xi32, #tpu.memory_space<vmem>>, vector<1x1x640xi32>
    %19 = vector.shape_cast %18 : vector<1x1x640xi32> to vector<1x640xi32>
    %20 = vector.shape_cast %17 : vector<1x640xi32> to vector<1x1x640xi32>
    tpu.vector_store %arg7[%c0_11, %c0_12, %c0_13], %20 {strides = array<i32>} : memref<1x1x640xi32, #tpu.memory_space<vmem>>, vector<1x1x640xi32>,
    %cst_14 = arith.constant 0.000000e+00 : f32
    %21 = vector.broadcast %cst_14 : f32 to vector<1x640xf32>
    %22 = arith.subf %21, %8 : vector<1x640xf32>
    %23 = math.exp %22 : vector<1x640xf32>
    %cst_15 = arith.constant 1.000000e+00 : f32
    %24 = vector.broadcast %cst_15 : f32 to vector<1x640xf32>
    %25 = arith.addf %24, %23 : vector<1x640xf32>
    %26 = tpu.reciprocal %25 {approx = true} : vector<1x640xf32> -> vector<1x640xf32>
    %cst_16 = arith.constant 0.000000e+00 : f32
    %27 = vector.broadcast %cst_16 : f32 to vector<1x640xf32>
    %28 = arith.subf %27, %3 : vector<1x640xf32>
    %29 = math.exp %28 : vector<1x640xf32>
    %cst_17 = arith.constant 1.000000e+00 : f32
    %30 = vector.broadcast %cst_17 : f32 to vector<1x640xf32>
    %31 = arith.addf %30, %29 : vector<1x640xf32>
    %32 = tpu.reciprocal %31 {approx = true} : vector<1x640xf32> -> vector<1x640xf32>
    %33 = arith.mulf %26, %32 : vector<1x640xf32>
    %34 = math.sqrt %33 : vector<1x640xf32>
    %c640_i32 = arith.constant 640 : i32
    %35 = arith.muli %arg1, %c640_i32 : i32
    %36 = tpu.iota {dimensions = array<i32: 1>} : vector<1x640xi32>
    %37 = vector.broadcast %35 : i32 to vector<1x640xi32>
    %38 = arith.addi %37, %36 : vector<1x640xi32>
    %c640_i32_18 = arith.constant 640 : i32
    %39 = vector.broadcast %c640_i32_18 : i32 to vector<1x640xi32>
    %40 = arith.cmpi slt, %38, %39 : vector<1x640xi32>
    %cst_19 = arith.constant 0xFF800000 : f32
    %41 = vector.broadcast %cst_19 : f32 to vector<1x640xf32>
    %42 = arith.select %40, %34, %41 : vector<1x640xi1>, vector<1x640xf32>
    %c0_20 = arith.constant 0 : index
    %c0_21 = arith.constant 0 : index
    %c0_22 = arith.constant 0 : index
    %43 = vector.load %arg6[%c0_20, %c0_21, %c0_22] : memref<1x1x640xf32, #tpu.memory_space<vmem>>, vector<1x1x640xf32>
    %44 = vector.shape_cast %43 : vector<1x1x640xf32> to vector<1x640xf32>
    %45 = vector.shape_cast %42 : vector<1x640xf32> to vector<1x1x640xf32>
    tpu.vector_store %arg6[%c0_20, %c0_21, %c0_22], %45 {strides = array<i32>} : memref<1x1x640xf32, #tpu.memory_space<vmem>>, vector<1x1x640xf32>,
    %46 = tpu.iota {dimensions = array<i32: 0>} : vector<4x640xi32>
    %c2_i32 = arith.constant 2 : i32
    %47 = vector.broadcast %c2_i32 : i32 to vector<4x640xi32>
    %48 = arith.cmpi slt, %46, %47 : vector<4x640xi32>
    %cst_23 = arith.constant -1.000000e+00 : f32
    %cst_24 = arith.constant 1.000000e+00 : f32
    %49 = vector.broadcast %cst_23 : f32 to vector<4x640xf32>
    %50 = vector.broadcast %cst_24 : f32 to vector<4x640xf32>
    %51 = arith.select %48, %49, %50 : vector<4x640xi1>, vector<4x640xf32>
    %52 = arith.mulf %51, %5 : vector<4x640xf32>
    %53 = arith.addf %6, %52 : vector<4x640xf32>
    %c0_25 = arith.constant 0 : index
    %c0_26 = arith.constant 0 : index
    %c0_27 = arith.constant 0 : index
    %54 = vector.load %arg8[%c0_25, %c0_26, %c0_27] : memref<1x4x640xf32, #tpu.memory_space<vmem>>, vector<1x4x640xf32>
    %55 = vector.shape_cast %54 : vector<1x4x640xf32> to vector<4x640xf32>
    %56 = vector.shape_cast %53 : vector<4x640xf32> to vector<1x4x640xf32>
    tpu.vector_store %arg8[%c0_25, %c0_26, %c0_27], %56 {strides = array<i32>} : memref<1x4x640xf32, #tpu.memory_space<vmem>>, vector<1x4x640xf32>,
    return
  }
  func.func @transform_0(%arg0: i32, %arg1: i32) -> (i32, i32, i32) {
    %c0_i32 = arith.constant 0 : i32
    %c0_i32_0 = arith.constant 0 : i32
    return %arg0, %c0_i32, %arg1 : i32, i32, i32
  }
  func.func @transform_1(%arg0: i32, %arg1: i32) -> (i32, i32, i32) {
    %c0_i32 = arith.constant 0 : i32
    %c0_i32_0 = arith.constant 0 : i32
    return %arg0, %c0_i32, %arg1 : i32, i32, i32
  }
  func.func @transform_2(%arg0: i32, %arg1: i32) -> (i32, i32, i32) {
    %c0_i32 = arith.constant 0 : i32
    %c0_i32_0 = arith.constant 0 : i32
    return %arg0, %c0_i32, %arg1 : i32, i32, i32
  }
  func.func @transform_3(%arg0: i32, %arg1: i32) -> (i32, i32) {
    %c0_i32 = arith.constant 0 : i32
    %c0_i32_0 = arith.constant 0 : i32
    return %c0_i32, %arg1 : i32, i32
  }
  func.func @transform_4(%arg0: i32, %arg1: i32) -> (i32, i32, i32) {
    %c0_i32 = arith.constant 0 : i32
    %c0_i32_0 = arith.constant 0 : i32
    return %arg0, %c0_i32, %arg1 : i32, i32, i32
  }
  func.func @transform_5(%arg0: i32, %arg1: i32) -> (i32, i32, i32) {
    %c0_i32 = arith.constant 0 : i32
    %c0_i32_0 = arith.constant 0 : i32
    return %arg0, %c0_i32, %arg1 : i32, i32, i32
  }
  func.func @transform_6(%arg0: i32, %arg1: i32) -> (i32, i32, i32) {
    %c0_i32 = arith.constant 0 : i32
    %c0_i32_0 = arith.constant 0 : i32
    return %arg0, %c0_i32, %arg1 : i32, i32, i32
  }
}

</mosaic_0001>

<llo_original>
// kernel: tpu_custom_call.1
$region0: #{tpu_custom_call.1}
  #allocation0 [shape = 'u32[]', space=smem, size = 0x4, offset = 0x4, fixed_abs, tag = 'smem constant byte address 0x4 - core index']
  #allocation1 [shape = 'u32[144,128]{1,0:T(1,128)}', space=vmem, size = 0x12000, scoped, tag = 'internal scratch']
  %s0 = inlined_call_operand.hbm [shape: f32[2,4,640], index: 0, kind: input, shape index: {}]
  %s1 = inlined_call_operand.hbm [shape: f32[2,1,640], index: 1, kind: input, shape index: {}]
  %s2 = inlined_call_operand.hbm [shape: f32[2,4,640], index: 2, kind: input, shape index: {}]
  %s3 = inlined_call_operand.hbm [shape: f32[4,640], index: 3, kind: input, shape index: {}]
  %s4 = inlined_call_operand.hbm [shape: f32[2,1,640], index: 4, kind: output, shape index: {0}]
  %s5 = inlined_call_operand.hbm [shape: s32[2,1,640], index: 5, kind: output, shape index: {1}]
  %s6 = inlined_call_operand.hbm [shape: f32[2,4,640], index: 6, kind: output, shape index: {2}]
  %7 = xla_tuple %s4, %s5, %s6
  %s8 = sld [smem:[#allocation0]]
  $region81: #{tpu_custom_call.1} parent=0
    _
  %s10 = ssub.s32 1, %s8
  %s11 = scalar_select 0, %s10, %s8
  $region1: #{tpu_custom_call.1} parent=0
    #allocation2 [shape = 'u8[20480]{0}', space=vmem, size = 0x5000, scoped, tag = 'input window, operand 0']
    #allocation3 [shape = 's32[2]{0}', space=sflag, size = 0x8, scoped, tag = 'scoped memory for tpu_custom_call.1']
    #allocation4 [shape = 's32[2]{0}', space=sflag, size = 0x8, scoped, tag = 'scoped memory for tpu_custom_call.1']
    #allocation5 [shape = 'u8[5120]{0}', space=vmem, size = 0x1400, scoped, tag = 'input window, operand 1']
    #allocation6 [shape = 's32[2]{0}', space=sflag, size = 0x8, scoped, tag = 'scoped memory for tpu_custom_call.1']
    #allocation7 [shape = 'u8[20480]{0}', space=vmem, size = 0x5000, scoped, tag = 'input window, operand 2']
    #allocation8 [shape = 'u8[10240]{0}', space=vmem, size = 0x2800, scoped, tag = 'input window, operand 3, single buffered']
    #allocation9 [shape = 's32[1]{0}', space=sflag, size = 0x4, scoped, tag = 'scoped memory for tpu_custom_call.1']
    #allocation10 [shape = 'u8[5120]{0}', space=vmem, size = 0x1400, scoped, tag = 'output window, operand 0']
    #allocation11 [shape = 'u8[5120]{0}', space=vmem, size = 0x1400, scoped, tag = 'output window, operand 1']
    #allocation12 [shape = 's32[2]{0}', space=sflag, size = 0x8, scoped, tag = 'scoped memory for tpu_custom_call.1']
    #allocation13 [shape = 'u8[20480]{0}', space=vmem, size = 0x5000, scoped, tag = 'output window, operand 2']
    %12 = vsyncpa [#allocation3], 0
    %s13 = scalar_lea.sflag [#allocation3], 1
    %14 = vsyncpa %s13, 0
    %15 = vsyncpa [#allocation6], 0
    %s16 = scalar_lea.sflag [#allocation6], 1
    %17 = vsyncpa %s16, 0
    %18 = vsyncpa [#allocation9], 0
    %19 = vsyncpa [#allocation4], 0
    %s20 = scalar_lea.sflag [#allocation4], 1
    %21 = vsyncpa %s20, 0
    %22 = vsyncpa [#allocation12], 0
    %s23 = scalar_lea.sflag [#allocation12], 1
    %24 = vsyncpa %s23, 0
    loop: start=0, step=1, limit=4
    $region2: #{tpu_custom_call.1} parent=1 // loop_pre_header
      _
    $region3: #{tpu_custom_call.1} parent=1 // loop_header
      %s26 = sphi 0, %s30
      %p27 = scmp.ge.s32.totalorder %s26, 4
      %s33 = sphi 0, %s45
      %s34 = sphi 0, %s41
      %s35 = sphi 0, %s33
      %s36 = sphi 0, %s34
      %s37 = sphi 0, %s35
      %s38 = sphi 0, %s36
      %s50 = sphi 0, %s52
      %s53 = sphi 0, %s50
      %s54 = sphi 0, %s53
      %s70 = sphi 0, %s54
      %s78 = sphi 0, %s80
      %s81 = sphi 0, %s78
      %s82 = sphi 0, %s81
      %s98 = sphi 0, %s82
      %s106 = sphi 0, %s108
      %s109 = sphi 0, %s106
      %s110 = sphi 0, %s109
      %s126 = sphi 0, %s110
      %s132 = sphi 0, %s134
      %s135 = sphi 0, %s132
      %s136 = sphi 0, %s135
      %s152 = sphi 0, %s136
      %s160 = sphi 0, %s162
      %s163 = sphi 0, %s160
      %s164 = sphi 0, %s163
      %s180 = sphi 0, %s164
      %s188 = sphi 0, %s190
      %s191 = sphi 0, %s188
      %s192 = sphi 0, %s191
      %s208 = sphi 0, %s192
      %s216 = sphi 0, %s218
      %s219 = sphi 0, %s216
      %s220 = sphi 0, %s219
      %s236 = sphi 0, %s220
    $region4: #{tpu_custom_call.1} parent=1 // loop_header_branch
      %29 = sbr.rel (%p27) target = $region8
    $region5: #{tpu_custom_call.1} parent=1 // loop_body
      %s31 = ssub.s32 %s26, 1
      %s32 = ssub.s32 %s26, 2
      %s39 = sadd.s32 1, %s34
      %p40 = scmp.ge.s32.totalorder %s39, 1
      %s41 = scalar_select %p40, 0, %s39
      %s42 = sadd.s32 1, %s33
      %s43 = scalar_select %p40, %s42, %s33
      %p44 = scmp.ge.s32.totalorder %s43, 2
      %s45 = scalar_select %p44, 0, %s43
      %s46 = ssub.s32 %s33, %s45
      %s47 = ssub.s32 %s34, %s41
      %s48 = sor.u32 %s46, %s47
      %p49 = scmp.eq.s32.totalorder %s48, 0
      %s51 = sadd.s32 %s50, 1
      %s52 = scalar_select %p49, %s50, %s51
      %p55 = pneg %p49
      %p56 = scmp.eq.s32.totalorder %s26, 1
      %p57 = por %p55, %p56
      %p58 = scmp.ne.s32.totalorder %s50, %s53
      %p59 = scmp.eq.s32.totalorder %s26, 0
      %p60 = por %p58, %p59
      %p61 = scmp.ne.s32.totalorder %s50, %s53
      %p62 = scmp.eq.s32.totalorder %s31, 1
      %p63 = por %p61, %p62
      %p64 = scmp.ne.s32.totalorder %s53, %s54
      %p65 = scmp.eq.s32.totalorder %s31, 0
      %p66 = por %p64, %p65
      %p67 = scmp.ne.s32.totalorder %s53, %s54
      %p68 = scmp.eq.s32.totalorder %s32, 1
      %p69 = por %p67, %p68
      %p71 = scmp.ne.s32.totalorder %s54, %s70
      %p72 = scmp.eq.s32.totalorder %s32, 0
      %p73 = por %p71, %p72
      %s74 = ssub.s32 %s33, %s45
      %s75 = ssub.s32 %s34, %s41
      %s76 = sor.u32 %s74, %s75
      %p77 = scmp.eq.s32.totalorder %s76, 0
      %s79 = sadd.s32 %s78, 1
      %s80 = scalar_select %p77, %s78, %s79
      %p83 = pneg %p77
      %p84 = scmp.eq.s32.totalorder %s26, 1
      %p85 = por %p83, %p84
      %p86 = scmp.ne.s32.totalorder %s78, %s81
      %p87 = scmp.eq.s32.totalorder %s26, 0
      %p88 = por %p86, %p87
      %p89 = scmp.ne.s32.totalorder %s78, %s81
      %p90 = scmp.eq.s32.totalorder %s31, 1
      %p91 = por %p89, %p90
      %p92 = scmp.ne.s32.totalorder %s81, %s82
      %p93 = scmp.eq.s32.totalorder %s31, 0
      %p94 = por %p92, %p93
      %p95 = scmp.ne.s32.totalorder %s81, %s82
      %p96 = scmp.eq.s32.totalorder %s32, 1
      %p97 = por %p95, %p96
      %p99 = scmp.ne.s32.totalorder %s82, %s98
      %p100 = scmp.eq.s32.totalorder %s32, 0
      %p101 = por %p99, %p100
      %s102 = ssub.s32 %s33, %s45
      %s103 = ssub.s32 %s34, %s41
      %s104 = sor.u32 %s102, %s103
      %p105 = scmp.eq.s32.totalorder %s104, 0
      %s107 = sadd.s32 %s106, 1
      %s108 = scalar_select %p105, %s106, %s107
      %p111 = pneg %p105
      %p112 = scmp.eq.s32.totalorder %s26, 1
      %p113 = por %p111, %p112
      %p114 = scmp.ne.s32.totalorder %s106, %s109
      %p115 = scmp.eq.s32.totalorder %s26, 0
      %p116 = por %p114, %p115
      %p117 = scmp.ne.s32.totalorder %s106, %s109
      %p118 = scmp.eq.s32.totalorder %s31, 1
      %p119 = por %p117, %p118
      %p120 = scmp.ne.s32.totalorder %s109, %s110
      %p121 = scmp.eq.s32.totalorder %s31, 0
      %p122 = por %p120, %p121
      %p123 = scmp.ne.s32.totalorder %s109, %s110
      %p124 = scmp.eq.s32.totalorder %s32, 1
      %p125 = por %p123, %p124
      %p127 = scmp.ne.s32.totalorder %s110, %s126
      %p128 = scmp.eq.s32.totalorder %s32, 0
      %p129 = por %p127, %p128
      %s130 = ssub.s32 %s34, %s41
      %p131 = scmp.eq.s32.totalorder %s130, 0
      %s133 = sadd.s32 %s132, 1
      %s134 = scalar_select %p131, %s132, %s133
      %p137 = pneg %p131
      %p138 = scmp.eq.s32.totalorder %s26, 1
      %p139 = por %p137, %p138
      %p140 = scmp.ne.s32.totalorder %s132, %s135
      %p141 = scmp.eq.s32.totalorder %s26, 0
      %p142 = por %p140, %p141
      %p143 = scmp.ne.s32.totalorder %s132, %s135
      %p144 = scmp.eq.s32.totalorder %s31, 1
      %p145 = por %p143, %p144
      %p146 = scmp.ne.s32.totalorder %s135, %s136
      %p147 = scmp.eq.s32.totalorder %s31, 0
      %p148 = por %p146, %p147
      %p149 = scmp.ne.s32.totalorder %s135, %s136
      %p150 = scmp.eq.s32.totalorder %s32, 1
      %p151 = por %p149, %p150
      %p153 = scmp.ne.s32.totalorder %s136, %s152
      %p154 = scmp.eq.s32.totalorder %s32, 0
      %p155 = por %p153, %p154
      %s156 = ssub.s32 %s33, %s45
      %s157 = ssub.s32 %s34, %s41
      %s158 = sor.u32 %s156, %s157
      %p159 = scmp.eq.s32.totalorder %s158, 0
      %s161 = sadd.s32 %s160, 1
      %s162 = scalar_select %p159, %s160, %s161
      %p165 = pneg %p159
      %p166 = scmp.eq.s32.totalorder %s26, 1
      %p167 = por %p165, %p166
      %p168 = scmp.ne.s32.totalorder %s160, %s163
      %p169 = scmp.eq.s32.totalorder %s26, 0
      %p170 = por %p168, %p169
      %p171 = scmp.ne.s32.totalorder %s160, %s163
      %p172 = scmp.eq.s32.totalorder %s31, 1
      %p173 = por %p171, %p172
      %p174 = scmp.ne.s32.totalorder %s163, %s164
      %p175 = scmp.eq.s32.totalorder %s31, 0
      %p176 = por %p174, %p175
      %p177 = scmp.ne.s32.totalorder %s163, %s164
      %p178 = scmp.eq.s32.totalorder %s32, 1
      %p179 = por %p177, %p178
      %p181 = scmp.ne.s32.totalorder %s164, %s180
      %p182 = scmp.eq.s32.totalorder %s32, 0
      %p183 = por %p181, %p182
      %s184 = ssub.s32 %s33, %s45
      %s185 = ssub.s32 %s34, %s41
      %s186 = sor.u32 %s184, %s185
      %p187 = scmp.eq.s32.totalorder %s186, 0
      %s189 = sadd.s32 %s188, 1
      %s190 = scalar_select %p187, %s188, %s189
      %p193 = pneg %p187
      %p194 = scmp.eq.s32.totalorder %s26, 1
      %p195 = por %p193, %p194
      %p196 = scmp.ne.s32.totalorder %s188, %s191
      %p197 = scmp.eq.s32.totalorder %s26, 0
      %p198 = por %p196, %p197
      %p199 = scmp.ne.s32.totalorder %s188, %s191
      %p200 = scmp.eq.s32.totalorder %s31, 1
      %p201 = por %p199, %p200
      %p202 = scmp.ne.s32.totalorder %s191, %s192
      %p203 = scmp.eq.s32.totalorder %s31, 0
      %p204 = por %p202, %p203
      %p205 = scmp.ne.s32.totalorder %s191, %s192
      %p206 = scmp.eq.s32.totalorder %s32, 1
      %p207 = por %p205, %p206
      %p209 = scmp.ne.s32.totalorder %s192, %s208
      %p210 = scmp.eq.s32.totalorder %s32, 0
      %p211 = por %p209, %p210
      %s212 = ssub.s32 %s33, %s45
      %s213 = ssub.s32 %s34, %s41
      %s214 = sor.u32 %s212, %s213
      %p215 = scmp.eq.s32.totalorder %s214, 0
      %s217 = sadd.s32 %s216, 1
      %s218 = scalar_select %p215, %s216, %s217
      %p221 = pneg %p215
      %p222 = scmp.eq.s32.totalorder %s26, 1
      %p223 = por %p221, %p222
      %p224 = scmp.ne.s32.totalorder %s216, %s219
      %p225 = scmp.eq.s32.totalorder %s26, 0
      %p226 = por %p224, %p225
      %p227 = scmp.ne.s32.totalorder %s216, %s219
      %p228 = scmp.eq.s32.totalorder %s31, 1
      %p229 = por %p227, %p228
      %p230 = scmp.ne.s32.totalorder %s219, %s220
      %p231 = scmp.eq.s32.totalorder %s31, 0
      %p232 = por %p230, %p231
      %p233 = scmp.ne.s32.totalorder %s219, %s220
      %p234 = scmp.eq.s32.totalorder %s32, 1
      %p235 = por %p233, %p234
      %p237 = scmp.ne.s32.totalorder %s220, %s236
      %p238 = scmp.eq.s32.totalorder %s32, 0
      %p239 = por %p237, %p238
      %p240 = scmp.le.s32.totalorder 1, %s26
      %p241 = scmp.lt.s32.totalorder %s26, 3
      %p242 = pnand %p240, %p241
      %p243 = pneg %p242
      // Predicated region
      $region9: #{tpu_custom_call.1} parent=5 // pred_check
        _
      $region10: #{tpu_custom_call.1} parent=5 // pred_check_branch
        %245 = sbr.rel (%p242) target = $region12
      $region11: #{tpu_custom_call.1} parent=5 // pred_region
        %s246 = ssub.s32 %s26, 1
        // Predicated region
        $region13: #{tpu_custom_call.1} parent=11 // pred_check
          %p247 = pneg %p148
        $region14: #{tpu_custom_call.1} parent=11 // pred_check_branch
          %249 = sbr.rel (%p247) target = $region16
        $region15: #{tpu_custom_call.1} parent=11 // pred_region
          %s250 = smul.u32 5, %s36
          %s252 = ssub.s32 320, 320
          %253 = vsyncadd [#allocation9], %s252
          %s254 = smul.addr %s250, 64
          %s255 = scalar_lea.hbm %s3, %s254
          %s257 = sshll.u32 [#allocation8], 4
          %s258 = int_to_ptr.vmem [resolvable:$true] %s257
          %260 = dma.hbm_to_vmem [thread:$0]  %s255, 320, %s258, [#allocation9]
        $region16: #{tpu_custom_call.1} parent=11 // pred_fallthru
          _
      $region12: #{tpu_custom_call.1} parent=5 // pred_fallthru
        _
      %p261 = scmp.lt.s32.totalorder %s26, 2
      // Predicated region
      $region17: #{tpu_custom_call.1} parent=5 // pred_check
        %p262 = pneg %p261
      $region18: #{tpu_custom_call.1} parent=5 // pred_check_branch
        %264 = sbr.rel (%p262) target = $region20
      $region19: #{tpu_custom_call.1} parent=5 // pred_region
        // Predicated region
        $region21: #{tpu_custom_call.1} parent=19 // pred_check
          %p265 = pneg %p60
        $region22: #{tpu_custom_call.1} parent=19 // pred_check_branch
          %267 = sbr.rel (%p265) target = $region24
        $region23: #{tpu_custom_call.1} parent=19 // pred_region
          %s268 = sand.u32 %s50, 1
          %s269 = scalar_lea.sflag [#allocation3], %s268
          %s270 = sand.u32 %s50, 1
          %s271 = smul.addr %s270, 20
          %s272 = scalar_lea.vmem [#allocation2], %s271
          %s273 = smul.u32 5, %s34
          %s275 = ssub.s32 320, 320
          %276 = vsyncadd %s269, %s275
          %s277 = smul.addr %s33, 5
          %s278 = sadd.s32 %s273, %s277
          %s279 = smul.addr %s278, 64
          %s280 = scalar_lea.hbm %s0, %s279
          %s282 = sshll.u32 %s272, 4
          %s283 = int_to_ptr.vmem [resolvable:$true] %s282
          %285 = dma.hbm_to_vmem [thread:$0]  %s280, 320, %s283, %s269
        $region24: #{tpu_custom_call.1} parent=19 // pred_fallthru
          _
        // Predicated region
        $region25: #{tpu_custom_call.1} parent=19 // pred_check
          %p286 = pneg %p88
        $region26: #{tpu_custom_call.1} parent=19 // pred_check_branch
          %288 = sbr.rel (%p286) target = $region28
        $region27: #{tpu_custom_call.1} parent=19 // pred_region
          %s289 = sand.u32 %s26, 1
          %s290 = scalar_lea.sflag [#allocation6], %s289
          %s291 = sand.u32 %s78, 1
          %s292 = smul.addr %s291, 5
          %s293 = scalar_lea.vmem [#allocation5], %s292
          %s294 = smul.u32 5, %s34
          %s296 = ssub.s32 80, 80
          %297 = vsyncadd %s290, %s296
          %s298 = smul.addr %s33, 5
          %s299 = sadd.s32 %s294, %s298
          %s300 = smul.addr %s299, 16
          %s301 = scalar_lea.hbm %s1, %s300
          %s303 = sshll.u32 %s293, 4
          %s304 = int_to_ptr.vmem [resolvable:$true] %s303
          %306 = dma.hbm_to_vmem [thread:$0]  %s301, 80, %s304, %s290
        $region28: #{tpu_custom_call.1} parent=19 // pred_fallthru
          _
        // Predicated region
        $region29: #{tpu_custom_call.1} parent=19 // pred_check
          %p307 = pneg %p116
        $region30: #{tpu_custom_call.1} parent=19 // pred_check_branch
          %309 = sbr.rel (%p307) target = $region32
        $region31: #{tpu_custom_call.1} parent=19 // pred_region
          %s310 = sand.u32 %s26, 1
          %s311 = scalar_lea.sflag [#allocation6], %s310
          %s312 = sand.u32 %s106, 1
          %s313 = smul.addr %s312, 20
          %s314 = scalar_lea.vmem [#allocation7], %s313
          %s315 = smul.u32 5, %s34
          %s317 = ssub.s32 320, 320
          %318 = vsyncadd %s311, %s317
          %s319 = smul.addr %s33, 5
          %s320 = sadd.s32 %s315, %s319
          %s321 = smul.addr %s320, 64
          %s322 = scalar_lea.hbm %s2, %s321
          %s324 = sshll.u32 %s314, 4
          %s325 = int_to_ptr.vmem [resolvable:$true] %s324
          %327 = dma.hbm_to_vmem [thread:$0]  %s322, 320, %s325, %s311
        $region32: #{tpu_custom_call.1} parent=19 // pred_fallthru
          _
      $region20: #{tpu_custom_call.1} parent=5 // pred_fallthru
        _
      %p328 = scmp.le.s32.totalorder 1, %s26
      %p329 = scmp.lt.s32.totalorder %s26, 3
      %p330 = pnand %p328, %p329
      %p331 = pneg %p330
      // Predicated region
      $region33: #{tpu_custom_call.1} parent=5 // pred_check
        _
      $region34: #{tpu_custom_call.1} parent=5 // pred_check_branch
        %333 = sbr.rel (%p330) target = $region36
      $region35: #{tpu_custom_call.1} parent=5 // pred_region
        %s334 = ssub.s32 %s26, 1
        %s335 = sand.u32 %s53, 1
        %s336 = scalar_lea.sflag [#allocation3], %s335
        %s337 = sand.u32 %s53, 1
        %s338 = smul.addr %s337, 20
        %s339 = scalar_lea.vmem [#allocation2], %s338
        // Predicated region
        $region37: #{tpu_custom_call.1} parent=35 // pred_check
          %p340 = pneg %p66
        $region38: #{tpu_custom_call.1} parent=35 // pred_check_branch
          %342 = sbr.rel (%p340) target = $region40
        $region39: #{tpu_custom_call.1} parent=35 // pred_region
          %343 = dma.done %s336, 320
        $region40: #{tpu_custom_call.1} parent=35 // pred_fallthru
          _
        %s344 = sand.u32 %s31, 1
        %s345 = scalar_lea.sflag [#allocation6], %s344
        %s346 = sand.u32 %s81, 1
        %s347 = smul.addr %s346, 5
        %s348 = scalar_lea.vmem [#allocation5], %s347
        // Predicated region
        $region41: #{tpu_custom_call.1} parent=35 // pred_check
          %p349 = pneg %p94
        $region42: #{tpu_custom_call.1} parent=35 // pred_check_branch
          %351 = sbr.rel (%p349) target = $region44
        $region43: #{tpu_custom_call.1} parent=35 // pred_region
          %352 = dma.done %s345, 80
        $region44: #{tpu_custom_call.1} parent=35 // pred_fallthru
          _
        %s353 = sand.u32 %s31, 1
        %s354 = scalar_lea.sflag [#allocation6], %s353
        %s355 = sand.u32 %s109, 1
        %s356 = smul.addr %s355, 20
        %s357 = scalar_lea.vmem [#allocation7], %s356
        // Predicated region
        $region45: #{tpu_custom_call.1} parent=35 // pred_check
          %p358 = pneg %p122
        $region46: #{tpu_custom_call.1} parent=35 // pred_check_branch
          %360 = sbr.rel (%p358) target = $region48
        $region47: #{tpu_custom_call.1} parent=35 // pred_region
          %361 = dma.done %s354, 320
        $region48: #{tpu_custom_call.1} parent=35 // pred_fallthru
          _
        // Predicated region
        $region49: #{tpu_custom_call.1} parent=35 // pred_check
          %p362 = pneg %p148
        $region50: #{tpu_custom_call.1} parent=35 // pred_check_branch
          %364 = sbr.rel (%p362) target = $region52
        $region51: #{tpu_custom_call.1} parent=35 // pred_region
          %365 = dma.done [#allocation9], 320
        $region52: #{tpu_custom_call.1} parent=35 // pred_fallthru
          _
        %s366 = sand.u32 %s53, 1
        %s367 = scalar_lea.sflag [#allocation3], %s366
        %s368 = sand.u32 %s53, 1
        %s369 = smul.addr %s368, 20
        %s370 = scalar_lea.vmem [#allocation2], %s369
        %p371 = pneg %p66
        %p372 = pneg %p63
        %s373 = sand.u32 %s31, 1
        %s374 = scalar_lea.sflag [#allocation6], %s373
        %s375 = sand.u32 %s81, 1
        %s376 = smul.addr %s375, 5
        %s377 = scalar_lea.vmem [#allocation5], %s376
        %p378 = pneg %p94
        %p379 = pneg %p91
        %s380 = sand.u32 %s31, 1
        %s381 = scalar_lea.sflag [#allocation6], %s380
        %s382 = sand.u32 %s109, 1
        %s383 = smul.addr %s382, 20
        %s384 = scalar_lea.vmem [#allocation7], %s383
        %p385 = pneg %p122
        %p386 = pneg %p119
        %p387 = pneg %p148
        %p388 = pneg %p145
        %p389 = pneg %p176
        %p390 = pneg %p173
        %s391 = sand.u32 %s163, 1
        %s392 = scalar_lea.sflag [#allocation4], %s391
        %s393 = sand.u32 %s163, 1
        %s394 = smul.addr %s393, 5
        %s395 = scalar_lea.vmem [#allocation10], %s394
        %p396 = pneg %p204
        %p397 = pneg %p201
        %s398 = sand.u32 %s31, 1
        %s399 = scalar_lea.sflag [#allocation12], %s398
        %s400 = sand.u32 %s191, 1
        %s401 = smul.addr %s400, 5
        %s402 = scalar_lea.vmem [#allocation11], %s401
        %p403 = pneg %p232
        %p404 = pneg %p229
        %s405 = sand.u32 %s31, 1
        %s406 = scalar_lea.sflag [#allocation12], %s405
        %s407 = sand.u32 %s219, 1
        %s408 = smul.addr %s407, 20
        %s409 = scalar_lea.vmem [#allocation13], %s408
        %s410 = smul.u32 5, %s36
        %s411 = smul.u32 5, %s36
        %s412 = smul.u32 5, %s36
        %s413 = smul.u32 5, %s36
        %s414 = smul.u32 5, %s36
        %s415 = smul.u32 5, %s36
        %s416 = smul.u32 5, %s36
        %v417 = vld [vmem:[%s339] sm:$0xff]
        %v418 = vld [vmem:[%s339 + $0x8] sm:$0xff]
        %v419 = vld [vmem:[%s339 + $0x10] sm:$0xf]
        %v420 = vld [vmem:[%s348] sm:$0x1f]
        %v421 = vld [vmem:[%s357] sm:$0xff]
        %v422 = vld [vmem:[%s357 + $0x8] sm:$0xff]
        %v423 = vld [vmem:[%s357 + $0x10] sm:$0xf]
        %v424 = vld [vmem:[#allocation8] sm:$0xff]
        %v425 = vld [vmem:[#allocation8 + $0x8] sm:$0xff]
        %v426 = vld [vmem:[#allocation8 + $0x10] sm:$0xf]
        %v429 = vcombine.high %v417, %v417
        %v430 = vcombine.high %v418, %v418
        %vm433 = vcmask 1043456
        %v434 = vsel %vm433, %v417, -inf
        %v435 = vrot.slane %v434, 4
        %v436 = vmax.f32 %v434, %v435
        %v437 = vrot.slane %v436, 2
        %v438 = vmax.f32 %v436, %v437
        %v439 = vrot.slane %v438, 1
        %v440 = vmax.f32 %v438, %v439
        %v441 = vsel %vm433, %v429, -inf
        %v442 = vrot.slane %v441, 4
        %v443 = vmax.f32 %v441, %v442
        %v444 = vrot.slane %v443, 2
        %v445 = vmax.f32 %v443, %v444
        %v446 = vrot.slane %v445, 1
        %v447 = vmax.f32 %v445, %v446
        %v448 = vsel %vm433, %v418, -inf
        %v449 = vrot.slane %v448, 4
        %v450 = vmax.f32 %v448, %v449
        %v451 = vrot.slane %v450, 2
        %v452 = vmax.f32 %v450, %v451
        %v453 = vrot.slane %v452, 1
        %v454 = vmax.f32 %v452, %v453
        %v455 = vsel %vm433, %v430, -inf
        %v456 = vrot.slane %v455, 4
        %v457 = vmax.f32 %v455, %v456
        %v458 = vrot.slane %v457, 2
        %v459 = vmax.f32 %v457, %v458
        %v460 = vrot.slane %v459, 1
        %v461 = vmax.f32 %v459, %v460
        %v462 = vsel %vm433, %v419, -inf
        %v463 = vrot.slane %v462, 4
        %v464 = vmax.f32 %v462, %v463
        %v465 = vrot.slane %v464, 2
        %v466 = vmax.f32 %v464, %v465
        %v467 = vrot.slane %v466, 1
        %v468 = vmax.f32 %v466, %v467
        %v469 = vlaneseq
        %v470 = vshrl.u32 %v469, 7
        %v475 = vcombine.low %v440, %v447
        %v476 = vcombine.low %v454, %v461
        %vm479 = vcmp.eq.f32.partialorder %v417, %v475
        %vm480 = vcmp.eq.f32.partialorder %v418, %v476
        %vm481 = vcmp.eq.f32.partialorder %v419, %v468
        %v483 = vunpack.c.l.s4 839922192
        %v484 = vunpack.c.0.s8 %v483
        %v485 = vlaneseq
        %v486 = vshrl.u32 %v485, 7
        %v487 = vsub.s32 %v484, %v486
        %v488 = vrot.slane %v470, %v487
        %v489 = vsel %vm479, %v488, 4
        %v490 = vsel %vm480, %v488, 4
        %v491 = vsel %vm481, %v488, 4
        %v492 = vcombine.high %v489, %v489
        %v493 = vcombine.high %v490, %v490
        %v494 = vsel %vm433, %v489, 2147483647
        %v495 = vrot.slane %v494, 4
        %vm496 = vcmp.lt.s32.totalorder %v494, %v495
        %v497 = vsel %vm496, %v494, %v495
        %v498 = vrot.slane %v497, 2
        %vm499 = vcmp.lt.s32.totalorder %v497, %v498
        %v500 = vsel %vm499, %v497, %v498
        %v501 = vrot.slane %v500, 1
        %vm502 = vcmp.lt.s32.totalorder %v500, %v501
        %v503 = vsel %vm502, %v500, %v501
        %v504 = vsel %vm433, %v492, 2147483647
        %v505 = vrot.slane %v504, 4
        %vm506 = vcmp.lt.s32.totalorder %v504, %v505
        %v507 = vsel %vm506, %v504, %v505
        %v508 = vrot.slane %v507, 2
        %vm509 = vcmp.lt.s32.totalorder %v507, %v508
        %v510 = vsel %vm509, %v507, %v508
        %v511 = vrot.slane %v510, 1
        %vm512 = vcmp.lt.s32.totalorder %v510, %v511
        %v513 = vsel %vm512, %v510, %v511
        %v514 = vsel %vm433, %v490, 2147483647
        %v515 = vrot.slane %v514, 4
        %vm516 = vcmp.lt.s32.totalorder %v514, %v515
        %v517 = vsel %vm516, %v514, %v515
        %v518 = vrot.slane %v517, 2
        %vm519 = vcmp.lt.s32.totalorder %v517, %v518
        %v520 = vsel %vm519, %v517, %v518
        %v521 = vrot.slane %v520, 1
        %vm522 = vcmp.lt.s32.totalorder %v520, %v521
        %v523 = vsel %vm522, %v520, %v521
        %v524 = vsel %vm433, %v493, 2147483647
        %v525 = vrot.slane %v524, 4
        %vm526 = vcmp.lt.s32.totalorder %v524, %v525
        %v527 = vsel %vm526, %v524, %v525
        %v528 = vrot.slane %v527, 2
        %vm529 = vcmp.lt.s32.totalorder %v527, %v528
        %v530 = vsel %vm529, %v527, %v528
        %v531 = vrot.slane %v530, 1
        %vm532 = vcmp.lt.s32.totalorder %v530, %v531
        %v533 = vsel %vm532, %v530, %v531
        %v534 = vsel %vm433, %v491, 2147483647
        %v535 = vrot.slane %v534, 4
        %vm536 = vcmp.lt.s32.totalorder %v534, %v535
        %v537 = vsel %vm536, %v534, %v535
        %v538 = vrot.slane %v537, 2
        %vm539 = vcmp.lt.s32.totalorder %v537, %v538
        %v540 = vsel %vm539, %v537, %v538
        %v541 = vrot.slane %v540, 1
        %vm542 = vcmp.lt.s32.totalorder %v540, %v541
        %v543 = vsel %vm542, %v540, %v541
        %v544 = vadd.s32 %v503, 1
        %v545 = vadd.s32 %v513, 1
        %v546 = vadd.s32 %v523, 1
        %v547 = vadd.s32 %v533, 1
        %v548 = vadd.s32 %v543, 1
        %v549 = vcombine.low %v544, %v545
        %v550 = vcombine.low %v546, %v547
        %v552 = vunpack.c.l.s4 1966171168
        %v553 = vunpack.c.0.s8 %v552
        %v554 = vlaneseq
        %v555 = vshrl.u32 %v554, 7
        %v556 = vsub.s32 %v553, %v555
        %v557 = vrot.slane %v549, %v556
        %v559 = vunpack.c.l.s4 1966171168
        %v560 = vunpack.c.0.s8 %v559
        %v561 = vlaneseq
        %v562 = vshrl.u32 %v561, 7
        %v563 = vsub.s32 %v560, %v562
        %v564 = vrot.slane %v550, %v563
        %v566 = vunpack.c.l.s4 1966171168
        %v567 = vunpack.c.0.s8 %v566
        %v568 = vlaneseq
        %v569 = vshrl.u32 %v568, 7
        %v570 = vsub.s32 %v567, %v569
        %v571 = vrot.slane %v548, %v570
        %v572 = vcombine.low %v557, %v564
        %v574 = vunpack.c.l.s4 1966171168
        %v575 = vunpack.c.0.s8 %v574
        %v576 = vlaneseq
        %v577 = vshrl.u32 %v576, 7
        %v578 = vsub.s32 %v575, %v577
        %v579 = vrot.slane %v572, %v578
        %v581 = vunpack.c.l.s4 1966171168
        %v582 = vunpack.c.0.s8 %v581
        %v583 = vlaneseq
        %v584 = vshrl.u32 %v583, 7
        %v585 = vsub.s32 %v582, %v584
        %v586 = vrot.slane %v571, %v585
        %v587 = vcombine.low %v579, %v586
        %v588 = vlaneseq
        %vm589 = vcmp.ge.s32.totalorder %v588, 0
        %vm590 = vcmp.lt.s32.totalorder %v588, 640
        %vm591 = vmand %vm589, %vm590
        %592 = vst.msk [vmem:[%s402] sm:$0x1f] %vm591, %v587
        %v593 = vsub.f32 0.0, %v440
        %v594 = vsub.f32 0.0, %v447
        %v595 = vsub.f32 0.0, %v454
        %v596 = vsub.f32 0.0, %v461
        %v597 = vsub.f32 0.0, %v468
        %v598 = vmul.f32 %v593, 1.442695
        %v599 = vpow.pop %v598
        %v600 = vmul.f32 %v594, 1.442695
        %v601 = vpow.pop %v600
        %v602 = vmul.f32 %v595, 1.442695
        %v603 = vpow.pop %v602
        %v604 = vmul.f32 %v596, 1.442695
        %v605 = vpow.pop %v604
        %v606 = vmul.f32 %v597, 1.442695
        %v607 = vpow.pop %v606
        %v608 = vadd.f32 %v599, 1.0
        %v609 = vadd.f32 %v601, 1.0
        %v610 = vadd.f32 %v603, 1.0
        %v611 = vadd.f32 %v605, 1.0
        %v612 = vadd.f32 %v607, 1.0
        %v613 = vrcp.pop %v608
        %v614 = vrcp.pop %v609
        %v615 = vrcp.pop %v610
        %v616 = vrcp.pop %v611
        %v617 = vrcp.pop %v612
        %v618 = vsub.f32 0.0, %v420
        %v619 = vmul.f32 %v618, 1.442695
        %v620 = vpow.pop %v619
        %v621 = vadd.f32 %v620, 1.0
        %v622 = vrcp.pop %v621
        %v624 = vlaneseq
        %v625 = vshrl.u32 %v624, 7
        %v626 = vsub.s32 0, %v625
        %v627 = vrot.slane %v622, %v626
        %v628 = vlaneseq
        %v629 = vshrl.u32 %v628, 7
        %v630 = vsub.s32 1, %v629
        %v631 = vrot.slane %v622, %v630
        %v632 = vlaneseq
        %v633 = vshrl.u32 %v632, 7
        %v634 = vsub.s32 2, %v633
        %v635 = vrot.slane %v622, %v634
        %v636 = vlaneseq
        %v637 = vshrl.u32 %v636, 7
        %v638 = vsub.s32 3, %v637
        %v639 = vrot.slane %v622, %v638
        %v640 = vlaneseq
        %v641 = vshrl.u32 %v640, 7
        %v642 = vsub.s32 4, %v641
        %v643 = vrot.slane %v622, %v642
        %v649 = vmul.f32 %v613, %v627
        %v650 = vmul.f32 %v614, %v631
        %v651 = vmul.f32 %v615, %v635
        %v652 = vmul.f32 %v616, %v639
        %v653 = vmul.f32 %v617, %v643
        %v654 = vrsqrt.pop %v649
        %v655 = vmul.f32 %v649, %v654
        %vm656 = vcmp.eq.f32.partialorder %v649, inf
        %v657 = vsel %vm656, %v649, %v655
        %vm658 = vcmp.eq.f32.partialorder %v649, 0.0
        %v659 = vand.u32 %v649, 2147483648
        %v660 = vsel %vm658, %v659, %v657
        %v661 = vrsqrt.pop %v650
        %v662 = vmul.f32 %v650, %v661
        %vm663 = vcmp.eq.f32.partialorder %v650, inf
        %v664 = vsel %vm663, %v650, %v662
        %vm665 = vcmp.eq.f32.partialorder %v650, 0.0
        %v666 = vand.u32 %v650, 2147483648
        %v667 = vsel %vm665, %v666, %v664
        %v668 = vrsqrt.pop %v651
        %v669 = vmul.f32 %v651, %v668
        %vm670 = vcmp.eq.f32.partialorder %v651, inf
        %v671 = vsel %vm670, %v651, %v669
        %vm672 = vcmp.eq.f32.partialorder %v651, 0.0
        %v673 = vand.u32 %v651, 2147483648
        %v674 = vsel %vm672, %v673, %v671
        %v675 = vrsqrt.pop %v652
        %v676 = vmul.f32 %v652, %v675
        %vm677 = vcmp.eq.f32.partialorder %v652, inf
        %v678 = vsel %vm677, %v652, %v676
        %vm679 = vcmp.eq.f32.partialorder %v652, 0.0
        %v680 = vand.u32 %v652, 2147483648
        %v681 = vsel %vm679, %v680, %v678
        %v682 = vrsqrt.pop %v653
        %v683 = vmul.f32 %v653, %v682
        %vm684 = vcmp.eq.f32.partialorder %v653, inf
        %v685 = vsel %vm684, %v653, %v683
        %vm686 = vcmp.eq.f32.partialorder %v653, 0.0
        %v687 = vand.u32 %v653, 2147483648
        %v688 = vsel %vm686, %v687, %v685
        %s689 = smul.u32 %s36, 640
        %v690 = vlaneseq
        %v691 = vand.u32 %v690, 127
        %v692 = vadd.s32 %v691, 128
        %v693 = vadd.s32 %v691, 256
        %v694 = vadd.s32 %v691, 384
        %v695 = vadd.s32 %v691, 512
        %v696 = vstv %s689
        %v697 = vadd.s32 %v696, %v691
        %v698 = vadd.s32 %v696, %v692
        %v699 = vadd.s32 %v696, %v693
        %v700 = vadd.s32 %v696, %v694
        %v701 = vadd.s32 %v696, %v695
        %vm702 = vcmp.lt.s32.totalorder %v697, 640
        %vm703 = vcmp.lt.s32.totalorder %v698, 640
        %vm704 = vcmp.lt.s32.totalorder %v699, 640
        %vm705 = vcmp.lt.s32.totalorder %v700, 640
        %vm706 = vcmp.lt.s32.totalorder %v701, 640
        %v707 = vsel %vm702, %v660, -inf
        %v708 = vsel %vm703, %v667, -inf
        %v709 = vsel %vm704, %v674, -inf
        %v710 = vsel %vm705, %v681, -inf
        %v711 = vsel %vm706, %v688, -inf
        %v717 = vcombine.low %v707, %v708
        %v718 = vcombine.low %v709, %v710
        %v720 = vunpack.c.l.s4 1966171168
        %v721 = vunpack.c.0.s8 %v720
        %v722 = vlaneseq
        %v723 = vshrl.u32 %v722, 7
        %v724 = vsub.s32 %v721, %v723
        %v725 = vrot.slane %v717, %v724
        %v727 = vunpack.c.l.s4 1966171168
        %v728 = vunpack.c.0.s8 %v727
        %v729 = vlaneseq
        %v730 = vshrl.u32 %v729, 7
        %v731 = vsub.s32 %v728, %v730
        %v732 = vrot.slane %v718, %v731
        %v734 = vunpack.c.l.s4 1966171168
        %v735 = vunpack.c.0.s8 %v734
        %v736 = vlaneseq
        %v737 = vshrl.u32 %v736, 7
        %v738 = vsub.s32 %v735, %v737
        %v739 = vrot.slane %v711, %v738
        %v740 = vcombine.low %v725, %v732
        %v742 = vunpack.c.l.s4 1966171168
        %v743 = vunpack.c.0.s8 %v742
        %v744 = vlaneseq
        %v745 = vshrl.u32 %v744, 7
        %v746 = vsub.s32 %v743, %v745
        %v747 = vrot.slane %v740, %v746
        %v749 = vunpack.c.l.s4 1966171168
        %v750 = vunpack.c.0.s8 %v749
        %v751 = vlaneseq
        %v752 = vshrl.u32 %v751, 7
        %v753 = vsub.s32 %v750, %v752
        %v754 = vrot.slane %v739, %v753
        %v755 = vcombine.low %v747, %v754
        %757 = vst.msk [vmem:[%s395] sm:$0x1f] %vm591, %v755
        %vm758 = vcmp.lt.s32.totalorder %v470, 2
        %v759 = vsel %vm758, -1.0, 1.0
        %v762 = vcombine.high %v421, %v421
        %v763 = vcombine.high %v422, %v422
        %v766 = vmul.f32 %v759, %v421
        %v767 = vmul.f32 %v759, %v762
        %v768 = vmul.f32 %v759, %v422
        %v769 = vmul.f32 %v759, %v763
        %v770 = vmul.f32 %v759, %v423
        %v775 = vcombine.low %v766, %v767
        %v776 = vcombine.low %v768, %v769
        %v779 = vadd.f32 %v424, %v775
        %v780 = vadd.f32 %v425, %v776
        %v781 = vadd.f32 %v426, %v770
        %782 = vst [vmem:[%s409] sm:$0xff] %v779
        %783 = vst [vmem:[%s409 + $0x8] sm:$0xff] %v780
        %784 = vst [vmem:[%s409 + $0x10] sm:$0xf] %v781
        %s785 = sand.u32 %s163, 1
        %s786 = scalar_lea.sflag [#allocation4], %s785
        %s787 = sand.u32 %s163, 1
        %s788 = smul.addr %s787, 5
        %s789 = scalar_lea.vmem [#allocation10], %s788
        %s790 = sand.u32 %s31, 1
        %s791 = scalar_lea.sflag [#allocation12], %s790
        %s792 = sand.u32 %s191, 1
        %s793 = smul.addr %s792, 5
        %s794 = scalar_lea.vmem [#allocation11], %s793
        %s795 = sand.u32 %s31, 1
        %s796 = scalar_lea.sflag [#allocation12], %s795
        %s797 = sand.u32 %s219, 1
        %s798 = smul.addr %s797, 20
        %s799 = scalar_lea.vmem [#allocation13], %s798
        // Predicated region
        $region53: #{tpu_custom_call.1} parent=35 // pred_check
          %p800 = pneg %p173
        $region54: #{tpu_custom_call.1} parent=35 // pred_check_branch
          %802 = sbr.rel (%p800) target = $region56
        $region55: #{tpu_custom_call.1} parent=35 // pred_region
          %s803 = smul.u32 5, %s36
          %s805 = ssub.s32 80, 80
          %806 = vsyncadd %s786, %s805
          %s807 = smul.addr %s35, 5
          %s808 = sadd.s32 %s803, %s807
          %s809 = smul.addr %s808, 16
          %s810 = scalar_lea.hbm %s4, %s809
          %s812 = sshll.u32 %s789, 4
          %s813 = int_to_ptr.vmem [resolvable:$true] %s812
          %815 = dma.vmem_to_hbm [thread:$0]  %s813, 80, %s810, %s786
        $region56: #{tpu_custom_call.1} parent=35 // pred_fallthru
          _
        // Predicated region
        $region57: #{tpu_custom_call.1} parent=35 // pred_check
          %p816 = pneg %p201
        $region58: #{tpu_custom_call.1} parent=35 // pred_check_branch
          %818 = sbr.rel (%p816) target = $region60
        $region59: #{tpu_custom_call.1} parent=35 // pred_region
          %s819 = smul.u32 5, %s36
          %s821 = ssub.s32 80, 80
          %822 = vsyncadd %s791, %s821
          %s823 = smul.addr %s35, 5
          %s824 = sadd.s32 %s819, %s823
          %s825 = smul.addr %s824, 16
          %s826 = scalar_lea.hbm %s5, %s825
          %s828 = sshll.u32 %s794, 4
          %s829 = int_to_ptr.vmem [resolvable:$true] %s828
          %831 = dma.vmem_to_hbm [thread:$0]  %s829, 80, %s826, %s791
        $region60: #{tpu_custom_call.1} parent=35 // pred_fallthru
          _
        // Predicated region
        $region61: #{tpu_custom_call.1} parent=35 // pred_check
          %p832 = pneg %p229
        $region62: #{tpu_custom_call.1} parent=35 // pred_check_branch
          %834 = sbr.rel (%p832) target = $region64
        $region63: #{tpu_custom_call.1} parent=35 // pred_region
          %s835 = smul.u32 5, %s36
          %s837 = ssub.s32 320, 320
          %838 = vsyncadd %s796, %s837
          %s839 = smul.addr %s35, 5
          %s840 = sadd.s32 %s835, %s839
          %s841 = smul.addr %s840, 64
          %s842 = scalar_lea.hbm %s6, %s841
          %s844 = sshll.u32 %s799, 4
          %s845 = int_to_ptr.vmem [resolvable:$true] %s844
          %847 = dma.vmem_to_hbm [thread:$0]  %s845, 320, %s842, %s796
        $region64: #{tpu_custom_call.1} parent=35 // pred_fallthru
          _
      $region36: #{tpu_custom_call.1} parent=5 // pred_fallthru
        _
      %p848 = scmp.le.s32.totalorder 2, %s26
      // Predicated region
      $region65: #{tpu_custom_call.1} parent=5 // pred_check
        %p849 = pneg %p848
      $region66: #{tpu_custom_call.1} parent=5 // pred_check_branch
        %851 = sbr.rel (%p849) target = $region68
      $region67: #{tpu_custom_call.1} parent=5 // pred_region
        %s852 = ssub.s32 %s26, 2
        // Predicated region
        $region69: #{tpu_custom_call.1} parent=67 // pred_check
          %p853 = pneg %p179
        $region70: #{tpu_custom_call.1} parent=67 // pred_check_branch
          %855 = sbr.rel (%p853) target = $region72
        $region71: #{tpu_custom_call.1} parent=67 // pred_region
          %s856 = sand.u32 %s164, 1
          %s857 = scalar_lea.sflag [#allocation4], %s856
          %s858 = sand.u32 %s164, 1
          %s859 = smul.addr %s858, 5
          %s860 = scalar_lea.vmem [#allocation10], %s859
          %861 = dma.done %s857, 80
        $region72: #{tpu_custom_call.1} parent=67 // pred_fallthru
          _
        // Predicated region
        $region73: #{tpu_custom_call.1} parent=67 // pred_check
          %p862 = pneg %p207
        $region74: #{tpu_custom_call.1} parent=67 // pred_check_branch
          %864 = sbr.rel (%p862) target = $region76
        $region75: #{tpu_custom_call.1} parent=67 // pred_region
          %s865 = sand.u32 %s32, 1
          %s866 = scalar_lea.sflag [#allocation12], %s865
          %s867 = sand.u32 %s192, 1
          %s868 = smul.addr %s867, 5
          %s869 = scalar_lea.vmem [#allocation11], %s868
          %870 = dma.done %s866, 80
        $region76: #{tpu_custom_call.1} parent=67 // pred_fallthru
          _
        // Predicated region
        $region77: #{tpu_custom_call.1} parent=67 // pred_check
          %p871 = pneg %p235
        $region78: #{tpu_custom_call.1} parent=67 // pred_check_branch
          %873 = sbr.rel (%p871) target = $region80
        $region79: #{tpu_custom_call.1} parent=67 // pred_region
          %s874 = sand.u32 %s32, 1
          %s875 = scalar_lea.sflag [#allocation12], %s874
          %s876 = sand.u32 %s220, 1
          %s877 = smul.addr %s876, 20
          %s878 = scalar_lea.vmem [#allocation13], %s877
          %879 = dma.done %s875, 320
        $region80: #{tpu_custom_call.1} parent=67 // pred_fallthru
          _
      $region68: #{tpu_custom_call.1} parent=5 // pred_fallthru
        _
    $region6: #{tpu_custom_call.1} parent=1 // loop_footer
      %s30 = sadd.s32 1, %s26
    $region7: #{tpu_custom_call.1} parent=1 // loop_footer_branch
      %25 = sbr.rel target = $region3
    $region8: #{tpu_custom_call.1} parent=1 // loop_exit
      _
    %880 = vsyncpa [#allocation3], 1
    %s881 = scalar_lea.sflag [#allocation3], 1
    %882 = vsyncpa %s881, 1
    %883 = vsyncpa [#allocation6], 1
    %s884 = scalar_lea.sflag [#allocation6], 1
    %885 = vsyncpa %s884, 1
    %886 = vsyncpa [#allocation9], 1
    %887 = vsyncpa [#allocation4], 1
    %s888 = scalar_lea.sflag [#allocation4], 1
    %889 = vsyncpa %s888, 1
    %890 = vsyncpa [#allocation12], 1
    %s891 = scalar_lea.sflag [#allocation12], 1
    %892 = vsyncpa %s891, 1

</llo_original>
